<compile_context>
chip_gen: v7x
topology: tpu7x:2x2x1
jax: 0.10.0
libtpu: 0.0.40
codegen_flags: <defaults>
</compile_context>

<pallas_src>
import functools

import jax
import jax.numpy as jnp
from jax.experimental import pallas as pl
from jax.experimental.pallas import tpu as pltpu


def _logit_transform_kernel(x_ref, mask_ref, o_ref, *, eps, factor):
    x = x_ref[...]                        # (tile_rows, tile_w)
    m = mask_ref[...]                     # (1, tile_w) float 0/1, broadcasts over rows
    x32 = x.astype(jnp.float32)
    # torch.logit(x, eps): clamp to [eps, 1-eps], then log(x / (1 - x)).
    xc = jnp.clip(x32, eps, 1.0 - eps)
    # log(xc) - log1p(-xc) == log(xc / (1 - xc)), slightly better near xc -> 1.
    logit = (jnp.log(xc) - jnp.log1p(-xc)) * factor
    o_ref[...] = jnp.where(m > 0.0, logit.astype(x.dtype), x)


def _round_up(a, b):
    return pl.cdiv(a, b) * b


def logit_transform(x, mask, eps=1e-6, factor=1.0):
    """Forward of LogitTransform.

    x:    [N, D] float array (values expected in ~[0, 1] on masked columns).
    mask: [D] bool/int array; True -> factor * logit(x, eps), False -> passthrough.
    """
    N, D = x.shape
    dtype = x.dtype
    itemsize = jnp.dtype(dtype).itemsize
    sublane = 8 * (4 // itemsize)          # 8 for f32, 16 for bf16
    mask_f = mask.astype(dtype)

    # --- Present a lane-dense (multiple-of-128) last dim when possible ----------
    if D < 128 and 128 % D == 0:
        rep = 128 // D                     # how many sample rows fold into one 128-lane row
        pad_n = (-N) % rep
        xw = jnp.pad(x, ((0, pad_n), (0, 0))) if pad_n else x
        n_rows = (N + pad_n) // rep
        width = 128
        xw = xw.reshape(n_rows, width)
        mask_row = jnp.tile(mask_f, rep).reshape(1, width)   # mask period D along lanes
        reshaped = True
    else:
        xw = x
        n_rows, width = N, D
        mask_row = mask_f.reshape(1, D)
        reshaped = False
        pad_n = 0

    # --- Tile the feature axis only when it is large and 128-aligned ------------
    if width % 128 == 0 and width > 1024:
        tile_w = 1024
        while width % tile_w != 0:
            tile_w -= 128
    else:
        tile_w = width                     # full-dim escape hatch if not 128-aligned

    # --- Row tile: as large as the VMEM budget allows (mem-bound streaming) -----
    # Double-buffered input + output tiles -> 4 * tile_bytes kept under ~8 MiB,
    # which fits every generation's scoped VMEM (v7x included) with headroom.
    budget_bytes = 8 << 20
    max_rows = max(sublane, (budget_bytes // (4 * tile_w * itemsize)) // sublane * sublane)
    tile_rows = min(1024, int(max_rows))
    # Prefer >= 2 row-grid steps so v7x's two TensorCores both get work.
    if tile_rows >= n_rows and n_rows > sublane:
        tile_rows = int(_round_up(pl.cdiv(n_rows, 2), sublane))
    # Never tile beyond the (sublane-rounded) problem size.
    tile_rows = min(tile_rows, int(_round_up(n_rows, sublane)))

    # --- Pad rows so the grid divides exactly (padded rows sliced off below) ----
    pad_r = (-n_rows) % tile_rows
    if pad_r:
        xw = jnp.pad(xw, ((0, pad_r), (0, 0)))   # zeros clamp to eps -> finite
    n_rows_p = n_rows + pad_r

    grid = (n_rows_p // tile_rows, width // tile_w)

    kernel = functools.partial(_logit_transform_kernel,
                               eps=float(eps), factor=float(factor))

    out = pl.pallas_call(
        kernel,
        out_shape=jax.ShapeDtypeStruct((n_rows_p, width), dtype),
        grid=grid,
        in_specs=[
            pl.BlockSpec((tile_rows, tile_w), lambda i, j: (i, j)),   # x tile
            pl.BlockSpec((1, tile_w), lambda i, j: (0, j)),           # mask follows D tile
        ],
        out_specs=pl.BlockSpec((tile_rows, tile_w), lambda i, j: (i, j)),
        compiler_params=pltpu.CompilerParams(
            dimension_semantics=("parallel", "parallel"),
            vmem_limit_bytes=32 << 20,     # raises v5e's 16 MiB default; safe on v7x
        ),
    )(xw, mask_row)

    # --- Undo padding / folding ---------------------------------------------------
    out = out[:n_rows, :]
    if reshaped:
        out = out.reshape(N + pad_n, D)[:N, :]
    else:
        out = out[:N, :]
    return out


def _reference(x, mask, eps, factor):
    xc = jnp.clip(x.astype(jnp.float32), eps, 1.0 - eps)
    lg = factor * jnp.log(xc / (1.0 - xc))
    return jnp.where(mask[None, :], lg.astype(x.dtype), x)


if __name__ == "__main__":
    key = jax.random.PRNGKey(0)

    N, D = 16, 32            # samples x features (small, consistent with 2-D torch.t input)
    eps = 1e-6
    factor = 1.0

    # Values in [0, 1] as the transform expects on masked columns.
    x = jax.random.uniform(key, (N, D), dtype=jnp.float32, minval=0.0, maxval=1.0)

    # Deterministic mask: logit-transform even-indexed feature columns, pass through odd ones.
    mask = (jnp.arange(D) % 2 == 0)

    out = logit_transform(x, mask, eps=eps, factor=factor)
    out = jax.block_until_ready(out)

    ref = _reference(x, mask, eps, factor)
    assert out.shape == (N, D) and out.dtype == x.dtype
    assert jnp.allclose(out, ref, atol=1e-5, rtol=1e-4), float(jnp.max(jnp.abs(out - ref)))

    print("KERNEL_OK")
</pallas_src>

<mosaic_0001>
module attributes {stable_mosaic.version = 11 : i64} {
  func.func @_logit_transform_kernel(%arg0: i32, %arg1: i32, %arg2: memref<8x128xf32, #tpu.memory_space<vmem>>, %arg3: memref<1x128xf32, #tpu.memory_space<vmem>>, %arg4: memref<8x128xf32, #tpu.memory_space<vmem>>) attributes {dimension_semantics = [#tpu.dimension_semantics<parallel>, #tpu.dimension_semantics<parallel>], iteration_bounds = array<i64: 1, 1>, scalar_prefetch = 0 : i64, scratch_operands = 0 : i64, tpu.core_type = #tpu.core_type<tc>, window_params = [{transform_indices = @transform_0, window_bounds = array<i64: 8, 128>}, {transform_indices = @transform_1, window_bounds = array<i64: 1, 128>}, {transform_indices = @transform_2, window_bounds = array<i64: 8, 128>}]} {
    %c0 = arith.constant 0 : index
    %c0_0 = arith.constant 0 : index
    %0 = vector.load %arg2[%c0, %c0_0] : memref<8x128xf32, #tpu.memory_space<vmem>>, vector<8x128xf32>
    %c0_1 = arith.constant 0 : index
    %c0_2 = arith.constant 0 : index
    %1 = vector.load %arg3[%c0_1, %c0_2] : memref<1x128xf32, #tpu.memory_space<vmem>>, vector<1x128xf32>
    %cst = arith.constant 9.99999997E-7 : f32
    %cst_3 = arith.constant 0.999998986 : f32
    %2 = vector.broadcast %cst : f32 to vector<8x128xf32>
    %3 = arith.maximumf %2, %0 : vector<8x128xf32>
    %4 = vector.broadcast %cst_3 : f32 to vector<8x128xf32>
    %5 = arith.minimumf %4, %3 : vector<8x128xf32>
    %6 = math.log %5 : vector<8x128xf32>
    %cst_4 = arith.constant 0.000000e+00 : f32
    %7 = vector.broadcast %cst_4 : f32 to vector<8x128xf32>
    %8 = arith.subf %7, %5 : vector<8x128xf32>
    %9 = math.log1p %8 : vector<8x128xf32>
    %10 = arith.subf %6, %9 : vector<8x128xf32>
    %cst_5 = arith.constant 1.000000e+00 : f32
    %11 = vector.broadcast %cst_5 : f32 to vector<8x128xf32>
    %12 = arith.mulf %10, %11 : vector<8x128xf32>
    %cst_6 = arith.constant 0.000000e+00 : f32
    %13 = vector.broadcast %cst_6 : f32 to vector<1x128xf32>
    %14 = arith.cmpf ogt, %1, %13 : vector<1x128xf32>
    %15 = vector.shape_cast %14 : vector<1x128xi1> to vector<1x128xi1>
    %16 = vector.broadcast %15 : vector<1x128xi1> to vector<8x128xi1>
    %17 = arith.select %16, %12, %0 : vector<8x128xi1>, vector<8x128xf32>
    %c0_7 = arith.constant 0 : index
    %c0_8 = arith.constant 0 : index
    %18 = vector.load %arg4[%c0_7, %c0_8] : memref<8x128xf32, #tpu.memory_space<vmem>>, vector<8x128xf32>
    tpu.vector_store %arg4[%c0_7, %c0_8], %17 {strides = array<i32>} : memref<8x128xf32, #tpu.memory_space<vmem>>, vector<8x128xf32>,
    return
  }
  func.func @transform_0(%arg0: i32, %arg1: i32) -> (i32, i32) {
    %c0_i32 = arith.constant 0 : i32
    return %arg0, %arg1 : i32, i32
  }
  func.func @transform_1(%arg0: i32, %arg1: i32) -> (i32, i32) {
    %c0_i32 = arith.constant 0 : i32
    %c0_i32_0 = arith.constant 0 : i32
    return %c0_i32, %arg1 : i32, i32
  }
  func.func @transform_2(%arg0: i32, %arg1: i32) -> (i32, i32) {
    %c0_i32 = arith.constant 0 : i32
    return %arg0, %arg1 : i32, i32
  }
}

</mosaic_0001>

<llo_original>
// kernel: tpu_custom_call.1
$region0: #{tpu_custom_call.1}
  #allocation0 [shape = 'u32[]', space=smem, size = 0x4, offset = 0x4, fixed_abs, tag = 'smem constant byte address 0x4 - core index']
  #allocation1 [shape = 'u32[144,128]{1,0:T(1,128)}', space=vmem, size = 0x12000, scoped, tag = 'internal scratch']
  %s0 = inlined_call_operand.hbm [shape: f32[8,128], index: 0, kind: input, shape index: {}]
  %s1 = inlined_call_operand.vmem [shape: f32[1,128], index: 1, kind: input, shape index: {}]
  %s2 = inlined_call_operand.hbm [shape: f32[8,128], index: 2, kind: output, shape index: {}]
  %s3 = sld [smem:[#allocation0]]
  $region22: #{tpu_custom_call.1} parent=0
    _
  %s5 = ssub.s32 1, %s3
  %s6 = scalar_select 0, %s5, %s3
  $region1: #{tpu_custom_call.1} parent=0
    #allocation2 [shape = 'u8[4096]{0}', space=vmem, size = 0x1000, scoped, tag = 'input window, operand 0, single buffered']
    #allocation3 [shape = 's32[1]{0}', space=sflag, size = 0x4, scoped, tag = 'scoped memory for tpu_custom_call.1']
    #allocation4 [shape = 's32[1]{0}', space=sflag, size = 0x4, scoped, tag = 'scoped memory for tpu_custom_call.1']
    #allocation5 [shape = 'u8[4096]{0}', space=vmem, size = 0x1000, scoped, tag = 'output window, operand 0, single buffered']
    %7 = vsyncpa [#allocation3], 0
    %8 = vsyncpa [#allocation4], 0
    // Predicated region
    $region2: #{tpu_custom_call.1} parent=1 // pred_check
      _
    $region3: #{tpu_custom_call.1} parent=1 // pred_check_branch
      %10 = sbr.rel (0) target = $region5
    $region4: #{tpu_custom_call.1} parent=1 // pred_region
      %s12 = ssub.s32 128, 128
      %13 = vsyncadd [#allocation3], %s12
      %s15 = sshll.u32 [#allocation2], 4
      %s16 = int_to_ptr.vmem [resolvable:$true] %s15
      %18 = dma.hbm_to_vmem [thread:$0]  %s0, 128, %s16, [#allocation3]
    $region5: #{tpu_custom_call.1} parent=1 // pred_fallthru
      _
    // Predicated region
    $region6: #{tpu_custom_call.1} parent=1 // pred_check
      _
    $region7: #{tpu_custom_call.1} parent=1 // pred_check_branch
      %20 = sbr.rel (0) target = $region9
    $region8: #{tpu_custom_call.1} parent=1 // pred_region
      _
    $region9: #{tpu_custom_call.1} parent=1 // pred_fallthru
      _
    // Predicated region
    $region10: #{tpu_custom_call.1} parent=1 // pred_check
      _
    $region11: #{tpu_custom_call.1} parent=1 // pred_check_branch
      %22 = sbr.rel (0) target = $region13
    $region12: #{tpu_custom_call.1} parent=1 // pred_region
      %23 = dma.done [#allocation3], 128
    $region13: #{tpu_custom_call.1} parent=1 // pred_fallthru
      _
    %v24 = vld [vmem:[#allocation2] sm:$0xff]
    %v25 = vld [vmem:[%s1] sm:$0x1]
    %v26 = vmax.f32 %v24, 1e-06
    %v27 = vmin.f32 %v26, 0.999999
    %v28 = vlog2.pop %v27
    %v29 = vmul.f32 %v28, 0.6931472
    %v30 = vsub.f32 0.0, %v27
    %v31 = vadd.f32 %v30, 1.0
    %v32 = vlog2.pop %v31
    %v33 = vmul.f32 %v32, 0.6931472
    %v34 = vmul.f32 -0.5, %v30
    %v35 = vadd.f32 %v34, 1.0
    %v36 = vmul.f32 %v35, %v30
    %v37 = vand.u32 2147483647, %v30
    %vm38 = vcmp.lt.f32.partialorder %v37, 0.0004427343
    %v39 = vsel %vm38, %v36, %v33
    %v40 = vsub.f32 %v29, %v39
    %vm41 = vcmp.gt.f32.partialorder %v25, 0.0
    %v42 = vsel %vm41, 1, 0
    %v43 = vlaneseq
    %v44 = vshrl.u32 %v43, 7
    %v45 = vsub.s32 0, %v44
    %v46 = vrot.slane %v42, %v45
    %vm47 = vcmp.eq.s32.totalorder %v46, 1
    %v48 = vsel %vm47, %v40, %v24
    %49 = vst [vmem:[#allocation5] sm:$0xff] %v48
    // Predicated region
    $region14: #{tpu_custom_call.1} parent=1 // pred_check
      _
    $region15: #{tpu_custom_call.1} parent=1 // pred_check_branch
      %51 = sbr.rel (0) target = $region17
    $region16: #{tpu_custom_call.1} parent=1 // pred_region
      %s53 = ssub.s32 128, 128
      %54 = vsyncadd [#allocation4], %s53
      %s56 = sshll.u32 [#allocation5], 4
      %s57 = int_to_ptr.vmem [resolvable:$true] %s56
      %59 = dma.vmem_to_hbm [thread:$0]  %s57, 128, %s2, [#allocation4]
    $region17: #{tpu_custom_call.1} parent=1 // pred_fallthru
      _
    // Predicated region
    $region18: #{tpu_custom_call.1} parent=1 // pred_check
      _
    $region19: #{tpu_custom_call.1} parent=1 // pred_check_branch
      %61 = sbr.rel (0) target = $region21
    $region20: #{tpu_custom_call.1} parent=1 // pred_region
      %62 = dma.done [#allocation4], 128
    $region21: #{tpu_custom_call.1} parent=1 // pred_fallthru
      _
    %63 = vsyncpa [#allocation3], 1
    %64 = vsyncpa [#allocation4], 1

</llo_original>
